<compile_context>
chip_gen: v6e
topology: v6e:2x2x1
jax: 0.10.0
libtpu: 0.0.40
codegen_flags: <defaults>
</compile_context>

<pallas_src>
import numpy as np
import jax
import jax.numpy as jnp
from jax import lax
from jax.experimental import pallas as pl
from jax.experimental.pallas import tpu as pltpu


# ----------------------------- Gaussian weights ------------------------------

def _gaussian_kernel_1d(kernel_size: int, sigma: float) -> np.ndarray:
    """1D factor of the module's separable Gaussian (w2d == outer(w1d, w1d))."""
    coords = np.arange(kernel_size, dtype=np.float64) - kernel_size // 2
    g = np.exp(-(coords ** 2) / (2.0 * sigma ** 2))
    g /= g.sum()
    return g.astype(np.float32)


def _gaussian_kernel_2d(kernel_size: int, sigma: float) -> np.ndarray:
    """Same formula as GaussianBlur._create_gaussian_kernel (dim=2); reference only."""
    coords = np.arange(kernel_size, dtype=np.float32) - kernel_size // 2
    yy, xx = np.meshgrid(coords, coords, indexing="ij")
    kern = np.exp(-(yy ** 2 + xx ** 2) / (2.0 * sigma ** 2))
    kern /= kern.sum()
    return kern.astype(np.float32)


# --------------------------------- kernel ------------------------------------

def _make_blur_kernel(K: int, w1d: np.ndarray, H: int, W: int):
    """Kernel over (TB, H*W) blocks: separable row+column Gaussian, replicate pad."""
    w = [float(v) for v in w1d]          # baked in as static Python floats
    p = K // 2
    HW = H * W
    w_is_pow2 = (W & (W - 1)) == 0

    def blur_kernel(x_ref, o_ref):
        x = x_ref[...]
        if x.dtype != jnp.float32:
            x = x.astype(jnp.float32)    # upcast in-register only
        tb = x.shape[0]

        # Hoisted edge masks (computed once, reused by every tap / jnp.where).
        idx = lax.broadcasted_iota(jnp.int32, (tb, HW), 1)
        col = (idx & (W - 1)) if w_is_pow2 else (idx % W)
        at_col0 = col == 0                     # first column of each image row
        at_colL = col == (W - 1)               # last column of each image row
        at_row0 = idx < W                      # first image row
        at_rowL = idx >= (H - 1) * W           # last image row

        # Row (W-axis) pass. Iterated clamped single shifts: after j steps
        # `left[c] == x[clamp(c-j)]` within each row; rolls go through the XLU,
        # the jnp.where fixes the wrap-around at row boundaries (replicate pad).
        t = w[p] * x
        left = x
        right = x
        for j in range(1, p + 1):
            left = jnp.where(at_col0, left, pltpu.roll(left, shift=1, axis=1))
            right = jnp.where(at_colL, right, pltpu.roll(right, shift=HW - 1, axis=1))
            t = t + w[p - j] * left + w[p + j] * right

        # Column (H-axis) pass: a 1-row shift is a roll by W lanes in the
        # flattened layout; clamp at the first / last image row.
        acc = w[p] * t
        up = t
        down = t
        for j in range(1, p + 1):
            up = jnp.where(at_row0, up, pltpu.roll(up, shift=W, axis=1))
            down = jnp.where(at_rowL, down, pltpu.roll(down, shift=HW - W, axis=1))
            acc = acc + w[p - j] * up + w[p + j] * down

        o_ref[...] = acc

    return blur_kernel


# ----------------------------- block-size heuristics --------------------------

def _vmem_config():
    """(vmem_limit_bytes, target_grid_steps), generation-aware."""
    cap = 128 * 1024 * 1024
    try:
        info = pltpu.get_tpu_info()
        cap = int(getattr(info, "vmem_capacity_bytes", cap))
    except Exception:
        pass
    if cap <= 64 * 1024 * 1024:
        # v7x-class: 64 MiB / TensorCore, 2 TCs -> smaller limit, >=4 steps per core.
        return 32 * 1024 * 1024, 8
    # v5e / v6e: 128 MiB, single TC -> big blocks, per-step overhead amortized.
    return 96 * 1024 * 1024, 2


def _pick_block_planes(nc, hw, in_bytes, vmem_limit, target_steps):
    """Planes per grid step: fill a conservative VMEM budget, keep ~target_steps."""
    # double-buffered input + double-buffered f32 output + ~6 live f32 temporaries
    bytes_per_plane = hw * (2 * in_bytes + 2 * 4 + 6 * 4)
    budget = int(vmem_limit * 0.6)
    tb_cap = max(1, budget // bytes_per_plane)
    tb = min(tb_cap, max(1, (nc + target_steps - 1) // target_steps))
    if tb >= nc:
        return nc                         # single block == full array dim (allowed)
    tb = (tb // 8) * 8                    # second-minor block dim: multiple of 8
    if tb == 0:
        tb = min(8, nc)
        # TODO(synk): planes larger than the VMEM budget need H-tiling with a
        # (kernel_size-1)-row halo (element-offset index map / manual DMA).
    return tb


# --------------------------------- wrapper ------------------------------------

def gaussian_blur(x: jax.Array, kernel_size: int = 3, sigma: float = 0.1) -> jax.Array:
    """2D depthwise Gaussian blur matching GaussianBlur(dim=2).forward.

    x: (N, C, H, W), (C, H, W) or (H, W). Output is float32 (module casts to float).
    """
    # TODO(synk): dim=3 (Conv3d) variant not implemented here; 2D path only.
    assert kernel_size % 2 == 1, "Kernel size should be an odd number."
    squeeze_2d = x.ndim == 2
    squeeze_3d = x.ndim == 3
    if squeeze_2d:
        x = x[None, None]
    elif squeeze_3d:
        x = x[None]
    N, C, H, W = x.shape
    NC, HW = N * C, H * W

    w1d = _gaussian_kernel_1d(kernel_size, sigma)
    in_bytes = jnp.dtype(x.dtype).itemsize
    vmem_limit, target_steps = _vmem_config()
    TB = _pick_block_planes(NC, HW, in_bytes, vmem_limit, target_steps)
    steps = (NC + TB - 1) // TB           # ragged last block OK: planes independent

    # Free, row-major reshape: each plane becomes one lane-dense row of length H*W.
    xr = x.reshape(NC, HW)

    out = pl.pallas_call(
        _make_blur_kernel(kernel_size, w1d, H, W),
        out_shape=jax.ShapeDtypeStruct((NC, HW), jnp.float32),
        grid_spec=pltpu.PrefetchScalarGridSpec(
            num_scalar_prefetch=0,
            grid=(steps,),
            in_specs=[pl.BlockSpec((TB, HW), lambda i: (i, 0))],
            out_specs=pl.BlockSpec((TB, HW), lambda i: (i, 0)),
        ),
        compiler_params=pltpu.CompilerParams(
            dimension_semantics=("parallel",),
            vmem_limit_bytes=vmem_limit,
        ),
    )(xr)

    out = out.reshape(N, C, H, W)
    if squeeze_2d:
        out = out[0, 0]
    elif squeeze_3d:
        out = out[0]
    return out


# -------------------------------- reference -----------------------------------

def _reference_blur(x, kernel_size=3, sigma=0.1):
    """Pure-JAX reference: replicate pad + depthwise 2D conv (matches PyTorch)."""
    N, C, H, W = x.shape
    p = kernel_size // 2
    w2d = jnp.asarray(_gaussian_kernel_2d(kernel_size, sigma))
    wk = jnp.tile(w2d[None, None], (C, 1, 1, 1))          # (C, 1, K, K), groups=C
    xp = jnp.pad(x.astype(jnp.float32), ((0, 0), (0, 0), (p, p), (p, p)), mode="edge")
    return lax.conv_general_dilated(
        xp, wk, window_strides=(1, 1), padding="VALID",
        dimension_numbers=("NCHW", "OIHW", "NCHW"),
        feature_group_count=C,
    )


if __name__ == "__main__":
    key = jax.random.PRNGKey(0)
    N, C, H, W = 2, 4, 16, 16
    x = jax.random.normal(key, (N, C, H, W), dtype=jnp.float32)

    # Default module config (sigma=0.1 is nearly an identity blur).
    out = jax.block_until_ready(gaussian_blur(x, kernel_size=3, sigma=0.1))
    ref = jax.block_until_ready(_reference_blur(x, kernel_size=3, sigma=0.1))
    assert out.shape == (N, C, H, W) and out.dtype == jnp.float32
    np.testing.assert_allclose(np.asarray(out), np.asarray(ref), rtol=1e-5, atol=1e-5)

    # Wider sigma actually exercises the off-center taps and the replicate clamp.
    out1 = jax.block_until_ready(gaussian_blur(x, kernel_size=3, sigma=1.0))
    ref1 = jax.block_until_ready(_reference_blur(x, kernel_size=3, sigma=1.0))
    np.testing.assert_allclose(np.asarray(out1), np.asarray(ref1), rtol=1e-5, atol=1e-5)

    # Larger kernel exercises the iterated (2-step) clamped shifts.
    out2 = jax.block_until_ready(gaussian_blur(x, kernel_size=5, sigma=1.5))
    ref2 = jax.block_until_ready(_reference_blur(x, kernel_size=5, sigma=1.5))
    np.testing.assert_allclose(np.asarray(out2), np.asarray(ref2), rtol=1e-5, atol=1e-5)

    # 2D-input path (module's x.view(1, *x.shape) branch).
    x2 = jax.random.normal(jax.random.PRNGKey(1), (H, W), dtype=jnp.float32)
    out3 = jax.block_until_ready(gaussian_blur(x2, kernel_size=3, sigma=1.0))
    ref3 = jax.block_until_ready(_reference_blur(x2[None, None], 3, 1.0))[0, 0]
    np.testing.assert_allclose(np.asarray(out3), np.asarray(ref3), rtol=1e-5, atol=1e-5)

    print("KERNEL_OK")
</pallas_src>

<mosaic_0001>
module attributes {stable_mosaic.version = 11 : i64} {
  func.func @blur_kernel(%arg0: i32, %arg1: memref<8x256xf32, #tpu.memory_space<vmem>>, %arg2: memref<8x256xf32, #tpu.memory_space<vmem>>) attributes {dimension_semantics = [#tpu.dimension_semantics<parallel>], iteration_bounds = array<i64: 1>, scalar_prefetch = 0 : i64, scratch_operands = 0 : i64, tpu.core_type = #tpu.core_type<tc>, window_params = [{transform_indices = @transform_0, window_bounds = array<i64: 8, 256>}, {transform_indices = @transform_1, window_bounds = array<i64: 8, 256>}]} {
    %c0 = arith.constant 0 : index
    %c0_0 = arith.constant 0 : index
    %0 = vector.load %arg1[%c0, %c0_0] : memref<8x256xf32, #tpu.memory_space<vmem>>, vector<8x256xf32>
    %1 = tpu.iota {dimensions = array<i32: 1>} : vector<8x256xi32>
    %c15_i32 = arith.constant 15 : i32
    %2 = vector.broadcast %c15_i32 : i32 to vector<8x256xi32>
    %3 = arith.andi %1, %2 : vector<8x256xi32>
    %c0_i32 = arith.constant 0 : i32
    %4 = vector.broadcast %c0_i32 : i32 to vector<8x256xi32>
    %5 = arith.cmpi eq, %3, %4 : vector<8x256xi32>
    %c15_i32_1 = arith.constant 15 : i32
    %6 = vector.broadcast %c15_i32_1 : i32 to vector<8x256xi32>
    %7 = arith.cmpi eq, %3, %6 : vector<8x256xi32>
    %c16_i32 = arith.constant 16 : i32
    %8 = vector.broadcast %c16_i32 : i32 to vector<8x256xi32>
    %9 = arith.cmpi slt, %1, %8 : vector<8x256xi32>
    %c240_i32 = arith.constant 240 : i32
    %10 = vector.broadcast %c240_i32 : i32 to vector<8x256xi32>
    %11 = arith.cmpi sge, %1, %10 : vector<8x256xi32>
    %cst = arith.constant 1.000000e+00 : f32
    %12 = vector.broadcast %cst : f32 to vector<8x256xf32>
    %13 = arith.mulf %12, %0 : vector<8x256xf32>
    %c1_i32 = arith.constant 1 : i32
    %14 = tpu.dynamic_rotate %0 by %c1_i32 dim 1 : vector<8x256xf32>, i32 -> vector<8x256xf32>
    %15 = arith.select %5, %0, %14 : vector<8x256xi1>, vector<8x256xf32>
    %c255_i32 = arith.constant 255 : i32
    %16 = tpu.dynamic_rotate %0 by %c255_i32 dim 1 : vector<8x256xf32>, i32 -> vector<8x256xf32>
    %17 = arith.select %7, %0, %16 : vector<8x256xi1>, vector<8x256xf32>
    %cst_2 = arith.constant 1.92874989E-22 : f32
    %18 = vector.broadcast %cst_2 : f32 to vector<8x256xf32>
    %19 = arith.mulf %18, %15 : vector<8x256xf32>
    %20 = arith.addf %13, %19 : vector<8x256xf32>
    %cst_3 = arith.constant 1.92874989E-22 : f32
    %21 = vector.broadcast %cst_3 : f32 to vector<8x256xf32>
    %22 = arith.mulf %21, %17 : vector<8x256xf32>
    %23 = arith.addf %20, %22 : vector<8x256xf32>
    %cst_4 = arith.constant 1.000000e+00 : f32
    %24 = vector.broadcast %cst_4 : f32 to vector<8x256xf32>
    %25 = arith.mulf %24, %23 : vector<8x256xf32>
    %c16_i32_5 = arith.constant 16 : i32
    %26 = tpu.dynamic_rotate %23 by %c16_i32_5 dim 1 : vector<8x256xf32>, i32 -> vector<8x256xf32>
    %27 = arith.select %9, %23, %26 : vector<8x256xi1>, vector<8x256xf32>
    %c240_i32_6 = arith.constant 240 : i32
    %28 = tpu.dynamic_rotate %23 by %c240_i32_6 dim 1 : vector<8x256xf32>, i32 -> vector<8x256xf32>
    %29 = arith.select %11, %23, %28 : vector<8x256xi1>, vector<8x256xf32>
    %cst_7 = arith.constant 1.92874989E-22 : f32
    %30 = vector.broadcast %cst_7 : f32 to vector<8x256xf32>
    %31 = arith.mulf %30, %27 : vector<8x256xf32>
    %32 = arith.addf %25, %31 : vector<8x256xf32>
    %cst_8 = arith.constant 1.92874989E-22 : f32
    %33 = vector.broadcast %cst_8 : f32 to vector<8x256xf32>
    %34 = arith.mulf %33, %29 : vector<8x256xf32>
    %35 = arith.addf %32, %34 : vector<8x256xf32>
    %c0_9 = arith.constant 0 : index
    %c0_10 = arith.constant 0 : index
    %36 = vector.load %arg2[%c0_9, %c0_10] : memref<8x256xf32, #tpu.memory_space<vmem>>, vector<8x256xf32>
    tpu.vector_store %arg2[%c0_9, %c0_10], %35 {strides = array<i32>} : memref<8x256xf32, #tpu.memory_space<vmem>>, vector<8x256xf32>,
    return
  }
  func.func @transform_0(%arg0: i32) -> (i32, i32) {
    %c0_i32 = arith.constant 0 : i32
    %c0_i32_0 = arith.constant 0 : i32
    return %arg0, %c0_i32 : i32, i32
  }
  func.func @transform_1(%arg0: i32) -> (i32, i32) {
    %c0_i32 = arith.constant 0 : i32
    %c0_i32_0 = arith.constant 0 : i32
    return %arg0, %c0_i32 : i32, i32
  }
}

</mosaic_0001>

<llo_original>
// kernel: tpu_custom_call.1
$region0: #{tpu_custom_call.1}
  #allocation0 [shape = 'u32[]', space=smem, size = 0x4, offset = 0x4, fixed_abs, tag = 'smem constant byte address 0x4 - core index']
  #allocation1 [shape = 'u32[144,128]{1,0:T(1,128)}', space=vmem, size = 0x12000, scoped, tag = 'internal scratch']
  %s0 = inlined_call_operand.hbm [shape: f32[8,256], index: 0, kind: input, shape index: {}]
  %s1 = inlined_call_operand.hbm [shape: f32[8,256], index: 1, kind: output, shape index: {}]
  %s2 = sld [smem:[#allocation0]]
  $region18: #{tpu_custom_call.1} parent=0
    _
  %s4 = ssub.s32 1, %s2
  %s5 = scalar_select 0, %s4, %s2
  $region1: #{tpu_custom_call.1} parent=0
    #allocation2 [shape = 'u8[8192]{0}', space=vmem, size = 0x2000, scoped, tag = 'input window, operand 0, single buffered']
    #allocation3 [shape = 's32[1]{0}', space=sflag, size = 0x4, scoped, tag = 'scoped memory for tpu_custom_call.1']
    #allocation4 [shape = 's32[1]{0}', space=sflag, size = 0x4, scoped, tag = 'scoped memory for tpu_custom_call.1']
    #allocation5 [shape = 'u8[8192]{0}', space=vmem, size = 0x2000, scoped, tag = 'output window, operand 0, single buffered']
    %6 = vsyncpa [#allocation3], 0
    %7 = vsyncpa [#allocation4], 0
    // Predicated region
    $region2: #{tpu_custom_call.1} parent=1 // pred_check
      _
    $region3: #{tpu_custom_call.1} parent=1 // pred_check_branch
      %9 = sbr.rel (0) target = $region5
    $region4: #{tpu_custom_call.1} parent=1 // pred_region
      %s11 = ssub.s32 256, 256
      %12 = vsyncadd [#allocation3], %s11
      %s14 = sshll.u32 [#allocation2], 4
      %s15 = int_to_ptr.vmem [resolvable:$true] %s14
      %17 = dma.hbm_to_vmem [thread:$0]  %s0, 256, %s15, [#allocation3]
    $region5: #{tpu_custom_call.1} parent=1 // pred_fallthru
      _
    // Predicated region
    $region6: #{tpu_custom_call.1} parent=1 // pred_check
      _
    $region7: #{tpu_custom_call.1} parent=1 // pred_check_branch
      %19 = sbr.rel (0) target = $region9
    $region8: #{tpu_custom_call.1} parent=1 // pred_region
      %20 = dma.done [#allocation3], 256
    $region9: #{tpu_custom_call.1} parent=1 // pred_fallthru
      _
    %v21 = vld [vmem:[#allocation2] sm:$0xff]
    %v22 = vld [vmem:[#allocation2 + $0x8] sm:$0xff]
    %v23 = vlaneseq
    %v24 = vand.u32 %v23, 127
    %v25 = vadd.s32 %v24, 128
    %v26 = vand.u32 %v24, 15
    %v27 = vand.u32 %v25, 15
    %vm28 = vcmp.eq.s32.totalorder %v26, 0
    %vm29 = vcmp.eq.s32.totalorder %v27, 0
    %vm30 = vcmp.eq.s32.totalorder %v26, 15
    %vm31 = vcmp.eq.s32.totalorder %v27, 15
    %vm32 = vcmp.lt.s32.totalorder %v24, 16
    %vm33 = vcmp.lt.s32.totalorder %v25, 16
    %vm34 = vcmp.ge.s32.totalorder %v24, 240
    %vm35 = vcmp.ge.s32.totalorder %v25, 240
    %36 = vrot.lane.b32.xlu0 %v21, 1
    %v37 = vpop.permute.xlu0 %36
    %38 = vrot.lane.b32.xlu0 %v22, 1
    %v39 = vpop.permute.xlu0 %38
    %vm40 = vcmp.lt.s32.totalorder %v24, 1
    %v41 = vsel %vm40, %v37, %v39
    %v42 = vsel %vm40, %v39, %v37
    %v43 = vsel %vm28, %v21, %v42
    %v44 = vsel %vm29, %v22, %v41
    %45 = vrot.lane.b32.xlu0 %v21, 127
    %v46 = vpop.permute.xlu0 %45
    %47 = vrot.lane.b32.xlu0 %v22, 127
    %v48 = vpop.permute.xlu0 %47
    %vm49 = vcmp.lt.s32.totalorder %v24, 127
    %v50 = vsel %vm49, %v46, %v48
    %v51 = vsel %vm49, %v48, %v46
    %v52 = vsel %vm30, %v21, %v50
    %v53 = vsel %vm31, %v22, %v51
    %v54 = vmul.f32 %v43, 1.9287499e-22
    %v55 = vmul.f32 %v44, 1.9287499e-22
    %v56 = vadd.f32 %v21, %v54
    %v57 = vadd.f32 %v22, %v55
    %v58 = vmul.f32 %v52, 1.9287499e-22
    %v59 = vmul.f32 %v53, 1.9287499e-22
    %v60 = vadd.f32 %v56, %v58
    %v61 = vadd.f32 %v57, %v59
    %62 = vrot.lane.b32.xlu0 %v60, 16
    %v63 = vpop.permute.xlu0 %62
    %64 = vrot.lane.b32.xlu0 %v61, 16
    %v65 = vpop.permute.xlu0 %64
    %v66 = vsel %vm32, %v63, %v65
    %v67 = vsel %vm32, %v65, %v63
    %v68 = vsel %vm32, %v60, %v67
    %v69 = vsel %vm33, %v61, %v66
    %70 = vrot.lane.b32.xlu0 %v60, 112
    %v71 = vpop.permute.xlu0 %70
    %72 = vrot.lane.b32.xlu0 %v61, 112
    %v73 = vpop.permute.xlu0 %72
    %vm74 = vcmp.lt.s32.totalorder %v24, 112
    %v75 = vsel %vm74, %v71, %v73
    %v76 = vsel %vm74, %v73, %v71
    %v77 = vsel %vm34, %v60, %v75
    %v78 = vsel %vm35, %v61, %v76
    %v79 = vmul.f32 %v68, 1.9287499e-22
    %v80 = vmul.f32 %v69, 1.9287499e-22
    %v81 = vadd.f32 %v60, %v79
    %v82 = vadd.f32 %v61, %v80
    %v83 = vmul.f32 %v77, 1.9287499e-22
    %v84 = vmul.f32 %v78, 1.9287499e-22
    %v85 = vadd.f32 %v81, %v83
    %v86 = vadd.f32 %v82, %v84
    %87 = vst [vmem:[#allocation5] sm:$0xff] %v85
    %88 = vst [vmem:[#allocation5 + $0x8] sm:$0xff] %v86
    // Predicated region
    $region10: #{tpu_custom_call.1} parent=1 // pred_check
      _
    $region11: #{tpu_custom_call.1} parent=1 // pred_check_branch
      %90 = sbr.rel (0) target = $region13
    $region12: #{tpu_custom_call.1} parent=1 // pred_region
      %s92 = ssub.s32 256, 256
      %93 = vsyncadd [#allocation4], %s92
      %s95 = sshll.u32 [#allocation5], 4
      %s96 = int_to_ptr.vmem [resolvable:$true] %s95
      %98 = dma.vmem_to_hbm [thread:$0]  %s96, 256, %s1, [#allocation4]
    $region13: #{tpu_custom_call.1} parent=1 // pred_fallthru
      _
    // Predicated region
    $region14: #{tpu_custom_call.1} parent=1 // pred_check
      _
    $region15: #{tpu_custom_call.1} parent=1 // pred_check_branch
      %100 = sbr.rel (0) target = $region17
    $region16: #{tpu_custom_call.1} parent=1 // pred_region
      %101 = dma.done [#allocation4], 256
    $region17: #{tpu_custom_call.1} parent=1 // pred_fallthru
      _
    %102 = vsyncpa [#allocation3], 1
    %103 = vsyncpa [#allocation4], 1

</llo_original>
